<compile_context>
chip_gen: v5e
topology: v5e:2x2
jax: 0.10.0
libtpu: 0.0.40
codegen_flags: <defaults>
</compile_context>

<pallas_src>
import functools

import jax
import jax.numpy as jnp
from jax.experimental import pallas as pl
from jax.experimental.pallas import tpu as pltpu


def _cdiv(a, b):
    return -(-a // b)


def _round_up(n, m):
    return _cdiv(n, m) * m


def _linear_kernel(w_ref, b_ref, x_ref, o_ref):
    """w_ref: SMEM (OUT, IN); b_ref: SMEM (OUT,);
    x_ref: VMEM (IN, tile_rows, 128); o_ref: VMEM (OUT, tile_rows, 128)."""
    out_f, in_f = w_ref.shape
    for j in range(out_f):                        # unrolled: OUT == 3
        acc = x_ref[0].astype(jnp.float32) * w_ref[j, 0] + b_ref[j]
        for k in range(1, in_f):                  # unrolled: IN == 3
            acc = acc + x_ref[k].astype(jnp.float32) * w_ref[j, k]
        o_ref[j] = acc.astype(o_ref.dtype)        # dense (tile_rows, 128) store


@functools.partial(jax.jit, static_argnames=("max_tile_rows",))
def block1_forward_feature_major(x_fm, weight, bias, *, max_tile_rows=2048):
    """Feature-major linear: x_fm (IN, B) -> y_fm (OUT, B).

    Use this entry point directly when the surrounding model keeps activations
    feature-major (avoids the (B,3)<->(3,B) transpose HBM passes entirely).
    Compute is f32 regardless of input dtype; output is in x_fm.dtype.
    """
    IN, B = x_fm.shape
    OUT = weight.shape[0]

    # --- tile selection: 128-lane batch groups ("rows") ---------------------
    rows = _cdiv(B, 128)
    n_steps = _cdiv(rows, max_tile_rows)
    if n_steps < 2 and rows >= 16:
        n_steps = 2                       # give v7x's two TensorCores work
    if n_steps >= 2:
        tile_rows = _round_up(_cdiv(rows, n_steps), 8)   # sublane-aligned
        n_steps = _cdiv(rows, tile_rows)
        rows_pad = tile_rows * n_steps
    else:
        tile_rows = max(rows, 1)          # single step: full-extent block
        rows_pad = tile_rows
        n_steps = 1
    b_pad = rows_pad * 128

    # --- relayout to (IN, rows_pad, 128): pad + free row-major reshape ------
    x_p = x_fm
    if b_pad != B:
        x_p = jnp.pad(x_p, ((0, 0), (0, b_pad - B)))
    x_p = x_p.reshape(IN, rows_pad, 128)

    y_p = pl.pallas_call(
        _linear_kernel,
        out_shape=jax.ShapeDtypeStruct((OUT, rows_pad, 128), x_fm.dtype),
        grid=(n_steps,),
        in_specs=[
            pl.BlockSpec(memory_space=pltpu.MemorySpace.SMEM),   # weight scalars
            pl.BlockSpec(memory_space=pltpu.MemorySpace.SMEM),   # bias scalars
            pl.BlockSpec((IN, tile_rows, 128), lambda i: (0, i, 0)),
        ],
        out_specs=pl.BlockSpec((OUT, tile_rows, 128), lambda i: (0, i, 0)),
        compiler_params=pltpu.CompilerParams(
            dimension_semantics=("parallel",),
            vmem_limit_bytes=32 * 1024 * 1024,
        ),
    )(weight.astype(jnp.float32), bias.astype(jnp.float32), x_p)

    return y_p.reshape(OUT, b_pad)[:, :B]


@functools.partial(jax.jit, static_argnames=("max_tile_rows",))
def block1_forward(x, weight, bias, *, max_tile_rows=2048):
    """Torch-convention linear: x (B, IN) -> y (B, OUT), y = x @ W.T + b.

    Pays one transpose on input and one on output to honor the (B, IN)
    convention; prefer block1_forward_feature_major in a feature-major model.
    """
    y_fm = block1_forward_feature_major(
        x.T, weight, bias, max_tile_rows=max_tile_rows)
    return y_fm.T


if __name__ == "__main__":
    key = jax.random.PRNGKey(0)
    k_x, k_w, k_b = jax.random.split(key, 3)

    B, IN, OUT = 8, 3, 3

    # Deterministic params mimicking torch.nn.Linear's uniform(-1/sqrt(in), 1/sqrt(in))
    bound = 1.0 / (IN ** 0.5)
    weight = jax.random.uniform(k_w, (OUT, IN), jnp.float32, -bound, bound)
    bias = jax.random.uniform(k_b, (OUT,), jnp.float32, -bound, bound)
    x = jax.random.normal(k_x, (B, IN), jnp.float32)

    y = block1_forward(x, weight, bias)
    jax.block_until_ready(y)

    # Reference check in plain JAX
    y_ref = x @ weight.T + bias
    assert y.shape == (B, OUT)
    assert jnp.allclose(y, y_ref, atol=1e-5, rtol=1e-5)

    print("KERNEL_OK")
</pallas_src>

<mosaic_0001>
module attributes {stable_mosaic.version = 11 : i64} {
  func.func @_linear_kernel(%arg0: i32, %arg1: memref<3x3xf32, #tpu.memory_space<smem>>, %arg2: memref<3xf32, #tpu.memory_space<smem>>, %arg3: memref<3x1x128xf32, #tpu.memory_space<vmem>>, %arg4: memref<3x1x128xf32, #tpu.memory_space<vmem>>) attributes {dimension_semantics = [#tpu.dimension_semantics<parallel>], iteration_bounds = array<i64: 1>, scalar_prefetch = 0 : i64, scratch_operands = 0 : i64, tpu.core_type = #tpu.core_type<tc>, window_params = [{transform_indices = @transform_0, window_bounds = array<i64: 3, 3>}, {transform_indices = @transform_1, window_bounds = array<i64: 3>}, {transform_indices = @transform_2, window_bounds = array<i64: 3, 1, 128>}, {transform_indices = @transform_3, window_bounds = array<i64: 3, 1, 128>}]} {
    %c0 = arith.constant 0 : index
    %c0_0 = arith.constant 0 : index
    %c0_1 = arith.constant 0 : index
    %0 = vector.load %arg3[%c0, %c0_0, %c0_1] : memref<3x1x128xf32, #tpu.memory_space<vmem>>, vector<1x1x128xf32>
    %1 = vector.shape_cast %0 : vector<1x1x128xf32> to vector<1x128xf32>
    %c0_2 = arith.constant 0 : index
    %c0_3 = arith.constant 0 : index
    %2 = memref.load %arg1[%c0_2, %c0_3] : memref<3x3xf32, #tpu.memory_space<smem>>
    %3 = vector.broadcast %2 : f32 to vector<1x128xf32>
    %4 = arith.mulf %1, %3 : vector<1x128xf32>
    %c0_4 = arith.constant 0 : index
    %5 = memref.load %arg2[%c0_4] : memref<3xf32, #tpu.memory_space<smem>>
    %6 = vector.broadcast %5 : f32 to vector<1x128xf32>
    %7 = arith.addf %4, %6 : vector<1x128xf32>
    %c1 = arith.constant 1 : index
    %c0_5 = arith.constant 0 : index
    %c0_6 = arith.constant 0 : index
    %8 = vector.load %arg3[%c1, %c0_5, %c0_6] : memref<3x1x128xf32, #tpu.memory_space<vmem>>, vector<1x1x128xf32>
    %9 = vector.shape_cast %8 : vector<1x1x128xf32> to vector<1x128xf32>
    %c0_7 = arith.constant 0 : index
    %c1_8 = arith.constant 1 : index
    %10 = memref.load %arg1[%c0_7, %c1_8] : memref<3x3xf32, #tpu.memory_space<smem>>
    %11 = vector.broadcast %10 : f32 to vector<1x128xf32>
    %12 = arith.mulf %9, %11 : vector<1x128xf32>
    %13 = arith.addf %7, %12 : vector<1x128xf32>
    %c2 = arith.constant 2 : index
    %c0_9 = arith.constant 0 : index
    %c0_10 = arith.constant 0 : index
    %14 = vector.load %arg3[%c2, %c0_9, %c0_10] : memref<3x1x128xf32, #tpu.memory_space<vmem>>, vector<1x1x128xf32>
    %15 = vector.shape_cast %14 : vector<1x1x128xf32> to vector<1x128xf32>
    %c0_11 = arith.constant 0 : index
    %c2_12 = arith.constant 2 : index
    %16 = memref.load %arg1[%c0_11, %c2_12] : memref<3x3xf32, #tpu.memory_space<smem>>
    %17 = vector.broadcast %16 : f32 to vector<1x128xf32>
    %18 = arith.mulf %15, %17 : vector<1x128xf32>
    %19 = arith.addf %13, %18 : vector<1x128xf32>
    %c0_13 = arith.constant 0 : index
    %c0_14 = arith.constant 0 : index
    %c0_15 = arith.constant 0 : index
    %20 = vector.load %arg4[%c0_13, %c0_14, %c0_15] : memref<3x1x128xf32, #tpu.memory_space<vmem>>, vector<1x1x128xf32>
    %21 = vector.shape_cast %20 : vector<1x1x128xf32> to vector<1x128xf32>
    %22 = vector.shape_cast %19 : vector<1x128xf32> to vector<1x1x128xf32>
    tpu.vector_store %arg4[%c0_13, %c0_14, %c0_15], %22 {strides = array<i32>} : memref<3x1x128xf32, #tpu.memory_space<vmem>>, vector<1x1x128xf32>,
    %c0_16 = arith.constant 0 : index
    %c0_17 = arith.constant 0 : index
    %c0_18 = arith.constant 0 : index
    %23 = vector.load %arg3[%c0_16, %c0_17, %c0_18] : memref<3x1x128xf32, #tpu.memory_space<vmem>>, vector<1x1x128xf32>
    %24 = vector.shape_cast %23 : vector<1x1x128xf32> to vector<1x128xf32>
    %c1_19 = arith.constant 1 : index
    %c0_20 = arith.constant 0 : index
    %25 = memref.load %arg1[%c1_19, %c0_20] : memref<3x3xf32, #tpu.memory_space<smem>>
    %26 = vector.broadcast %25 : f32 to vector<1x128xf32>
    %27 = arith.mulf %24, %26 : vector<1x128xf32>
    %c1_21 = arith.constant 1 : index
    %28 = memref.load %arg2[%c1_21] : memref<3xf32, #tpu.memory_space<smem>>
    %29 = vector.broadcast %28 : f32 to vector<1x128xf32>
    %30 = arith.addf %27, %29 : vector<1x128xf32>
    %c1_22 = arith.constant 1 : index
    %c0_23 = arith.constant 0 : index
    %c0_24 = arith.constant 0 : index
    %31 = vector.load %arg3[%c1_22, %c0_23, %c0_24] : memref<3x1x128xf32, #tpu.memory_space<vmem>>, vector<1x1x128xf32>
    %32 = vector.shape_cast %31 : vector<1x1x128xf32> to vector<1x128xf32>
    %c1_25 = arith.constant 1 : index
    %c1_26 = arith.constant 1 : index
    %33 = memref.load %arg1[%c1_25, %c1_26] : memref<3x3xf32, #tpu.memory_space<smem>>
    %34 = vector.broadcast %33 : f32 to vector<1x128xf32>
    %35 = arith.mulf %32, %34 : vector<1x128xf32>
    %36 = arith.addf %30, %35 : vector<1x128xf32>
    %c2_27 = arith.constant 2 : index
    %c0_28 = arith.constant 0 : index
    %c0_29 = arith.constant 0 : index
    %37 = vector.load %arg3[%c2_27, %c0_28, %c0_29] : memref<3x1x128xf32, #tpu.memory_space<vmem>>, vector<1x1x128xf32>
    %38 = vector.shape_cast %37 : vector<1x1x128xf32> to vector<1x128xf32>
    %c1_30 = arith.constant 1 : index
    %c2_31 = arith.constant 2 : index
    %39 = memref.load %arg1[%c1_30, %c2_31] : memref<3x3xf32, #tpu.memory_space<smem>>
    %40 = vector.broadcast %39 : f32 to vector<1x128xf32>
    %41 = arith.mulf %38, %40 : vector<1x128xf32>
    %42 = arith.addf %36, %41 : vector<1x128xf32>
    %c1_32 = arith.constant 1 : index
    %c0_33 = arith.constant 0 : index
    %c0_34 = arith.constant 0 : index
    %43 = vector.load %arg4[%c1_32, %c0_33, %c0_34] : memref<3x1x128xf32, #tpu.memory_space<vmem>>, vector<1x1x128xf32>
    %44 = vector.shape_cast %43 : vector<1x1x128xf32> to vector<1x128xf32>
    %45 = vector.shape_cast %42 : vector<1x128xf32> to vector<1x1x128xf32>
    tpu.vector_store %arg4[%c1_32, %c0_33, %c0_34], %45 {strides = array<i32>} : memref<3x1x128xf32, #tpu.memory_space<vmem>>, vector<1x1x128xf32>,
    %c0_35 = arith.constant 0 : index
    %c0_36 = arith.constant 0 : index
    %c0_37 = arith.constant 0 : index
    %46 = vector.load %arg3[%c0_35, %c0_36, %c0_37] : memref<3x1x128xf32, #tpu.memory_space<vmem>>, vector<1x1x128xf32>
    %47 = vector.shape_cast %46 : vector<1x1x128xf32> to vector<1x128xf32>
    %c2_38 = arith.constant 2 : index
    %c0_39 = arith.constant 0 : index
    %48 = memref.load %arg1[%c2_38, %c0_39] : memref<3x3xf32, #tpu.memory_space<smem>>
    %49 = vector.broadcast %48 : f32 to vector<1x128xf32>
    %50 = arith.mulf %47, %49 : vector<1x128xf32>
    %c2_40 = arith.constant 2 : index
    %51 = memref.load %arg2[%c2_40] : memref<3xf32, #tpu.memory_space<smem>>
    %52 = vector.broadcast %51 : f32 to vector<1x128xf32>
    %53 = arith.addf %50, %52 : vector<1x128xf32>
    %c1_41 = arith.constant 1 : index
    %c0_42 = arith.constant 0 : index
    %c0_43 = arith.constant 0 : index
    %54 = vector.load %arg3[%c1_41, %c0_42, %c0_43] : memref<3x1x128xf32, #tpu.memory_space<vmem>>, vector<1x1x128xf32>
    %55 = vector.shape_cast %54 : vector<1x1x128xf32> to vector<1x128xf32>
    %c2_44 = arith.constant 2 : index
    %c1_45 = arith.constant 1 : index
    %56 = memref.load %arg1[%c2_44, %c1_45] : memref<3x3xf32, #tpu.memory_space<smem>>
    %57 = vector.broadcast %56 : f32 to vector<1x128xf32>
    %58 = arith.mulf %55, %57 : vector<1x128xf32>
    %59 = arith.addf %53, %58 : vector<1x128xf32>
    %c2_46 = arith.constant 2 : index
    %c0_47 = arith.constant 0 : index
    %c0_48 = arith.constant 0 : index
    %60 = vector.load %arg3[%c2_46, %c0_47, %c0_48] : memref<3x1x128xf32, #tpu.memory_space<vmem>>, vector<1x1x128xf32>
    %61 = vector.shape_cast %60 : vector<1x1x128xf32> to vector<1x128xf32>
    %c2_49 = arith.constant 2 : index
    %c2_50 = arith.constant 2 : index
    %62 = memref.load %arg1[%c2_49, %c2_50] : memref<3x3xf32, #tpu.memory_space<smem>>
    %63 = vector.broadcast %62 : f32 to vector<1x128xf32>
    %64 = arith.mulf %61, %63 : vector<1x128xf32>
    %65 = arith.addf %59, %64 : vector<1x128xf32>
    %c2_51 = arith.constant 2 : index
    %c0_52 = arith.constant 0 : index
    %c0_53 = arith.constant 0 : index
    %66 = vector.load %arg4[%c2_51, %c0_52, %c0_53] : memref<3x1x128xf32, #tpu.memory_space<vmem>>, vector<1x1x128xf32>
    %67 = vector.shape_cast %66 : vector<1x1x128xf32> to vector<1x128xf32>
    %68 = vector.shape_cast %65 : vector<1x128xf32> to vector<1x1x128xf32>
    tpu.vector_store %arg4[%c2_51, %c0_52, %c0_53], %68 {strides = array<i32>} : memref<3x1x128xf32, #tpu.memory_space<vmem>>, vector<1x1x128xf32>,
    return
  }
  func.func @transform_0(%arg0: i32) -> (i32, i32) {
    %c0_i32 = arith.constant 0 : i32
    %c0_i32_0 = arith.constant 0 : i32
    %c0_i32_1 = arith.constant 0 : i32
    return %c0_i32, %c0_i32_0 : i32, i32
  }
  func.func @transform_1(%arg0: i32) -> i32 {
    %c0_i32 = arith.constant 0 : i32
    %c0_i32_0 = arith.constant 0 : i32
    return %c0_i32 : i32
  }
  func.func @transform_2(%arg0: i32) -> (i32, i32, i32) {
    %c0_i32 = arith.constant 0 : i32
    %c0_i32_0 = arith.constant 0 : i32
    %c0_i32_1 = arith.constant 0 : i32
    return %c0_i32, %arg0, %c0_i32_0 : i32, i32, i32
  }
  func.func @transform_3(%arg0: i32) -> (i32, i32, i32) {
    %c0_i32 = arith.constant 0 : i32
    %c0_i32_0 = arith.constant 0 : i32
    %c0_i32_1 = arith.constant 0 : i32
    return %c0_i32, %arg0, %c0_i32_0 : i32, i32, i32
  }
}

</mosaic_0001>

<llo_original>
// kernel: block1_forward_feature_major.1
$region0: #{block1_forward_feature_major.1}
  #allocation0 [shape = 'u32[]', space=smem, size = 0x4, offset = 0x4, fixed_abs, tag = 'smem constant byte address 0x4 - core index']
  #allocation1 [shape = 'u32[72,128]{1,0:T(1,128)}', space=vmem, size = 0x9000, scoped, tag = 'internal scratch']
  %s0 = inlined_call_operand.vmem [shape: f32[3,3], index: 0, kind: input, shape index: {}]
  %s1 = inlined_call_operand.vmem [shape: f32[3], index: 1, kind: input, shape index: {}]
  %s2 = inlined_call_operand.vmem [shape: f32[3,1,128], index: 2, kind: input, shape index: {}]
  %s3 = inlined_call_operand.vmem [shape: f32[3,1,128], index: 3, kind: output, shape index: {}]
  %s4 = sld [smem:[#allocation0]]
  $region30: #{block1_forward_feature_major.1} parent=0
    _
  %s6 = ssub.s32 1, %s4
  %s7 = scalar_select 0, %s6, %s4
  $region1: #{block1_forward_feature_major.1} parent=0
    #allocation2 [shape = 'u8[2048]{0}', space=smem, size = 0x800, scoped, tag = 'input window, operand 0, single buffered']
    #allocation3 [shape = 's32[1]{0}', space=sflag, size = 0x4, scoped, tag = 'scoped memory for block1_forward_feature_major.1']
    #allocation4 [shape = 'u8[512]{0}', space=smem, size = 0x200, scoped, tag = 'input window, operand 1, single buffered']
    #allocation5 [shape = 's32[1]{0}', space=sflag, size = 0x4, scoped, tag = 'scoped memory for block1_forward_feature_major.1']
    %8 = vsyncpa [#allocation3], 0
    %9 = vsyncpa [#allocation5], 0
    // Predicated region
    $region2: #{block1_forward_feature_major.1} parent=1 // pred_check
      _
    $region3: #{block1_forward_feature_major.1} parent=1 // pred_check_branch
      %11 = sbr.rel (0) target = $region5
    $region4: #{block1_forward_feature_major.1} parent=1 // pred_region
      %13 = vsyncadd [#allocation3], 0
      %s15 = sshll.u32 %s0, 4
      %s16 = int_to_ptr.vmem [resolvable:$true] %s15
      %18 = dma.vmem_to_smem %s16, 64, [#allocation2], [#allocation3]
    $region5: #{block1_forward_feature_major.1} parent=1 // pred_fallthru
      _
    // Predicated region
    $region6: #{block1_forward_feature_major.1} parent=1 // pred_check
      _
    $region7: #{block1_forward_feature_major.1} parent=1 // pred_check_branch
      %20 = sbr.rel (0) target = $region9
    $region8: #{block1_forward_feature_major.1} parent=1 // pred_region
      %22 = vsyncadd [#allocation5], 0
      %s24 = sshll.u32 %s1, 4
      %s25 = int_to_ptr.vmem [resolvable:$true] %s24
      %27 = dma.vmem_to_smem %s25, 16, [#allocation4], [#allocation5]
    $region9: #{block1_forward_feature_major.1} parent=1 // pred_fallthru
      _
    // Predicated region
    $region10: #{block1_forward_feature_major.1} parent=1 // pred_check
      _
    $region11: #{block1_forward_feature_major.1} parent=1 // pred_check_branch
      %29 = sbr.rel (0) target = $region13
    $region12: #{block1_forward_feature_major.1} parent=1 // pred_region
      _
    $region13: #{block1_forward_feature_major.1} parent=1 // pred_fallthru
      _
    // Predicated region
    $region14: #{block1_forward_feature_major.1} parent=1 // pred_check
      _
    $region15: #{block1_forward_feature_major.1} parent=1 // pred_check_branch
      %31 = sbr.rel (0) target = $region17
    $region16: #{block1_forward_feature_major.1} parent=1 // pred_region
      %33 = dma.done [#allocation3], 64
    $region17: #{block1_forward_feature_major.1} parent=1 // pred_fallthru
      _
    // Predicated region
    $region18: #{block1_forward_feature_major.1} parent=1 // pred_check
      _
    $region19: #{block1_forward_feature_major.1} parent=1 // pred_check_branch
      %35 = sbr.rel (0) target = $region21
    $region20: #{block1_forward_feature_major.1} parent=1 // pred_region
      %37 = dma.done [#allocation5], 16
    $region21: #{block1_forward_feature_major.1} parent=1 // pred_fallthru
      _
    %38 = sfence
    %v39 = vld [vmem:[%s2] sm:$0x1]
    %s40 = sld [smem:[#allocation2]]
    %v41 = vstv %s40
    %v42 = vmul.f32 %v39, %v41
    %s43 = sld [smem:[#allocation4]]
    %v44 = vstv %s43
    %v45 = vadd.f32 %v42, %v44
    %s46 = scalar_lea.vmem %s2, 1
    %v47 = vld [vmem:[%s46] sm:$0x1]
    %s48 = sld [smem:[#allocation2 + $0x1]]
    %v49 = vstv %s48
    %v50 = vmul.f32 %v47, %v49
    %v51 = vadd.f32 %v45, %v50
    %s52 = scalar_lea.vmem %s2, 2
    %v53 = vld [vmem:[%s52] sm:$0x1]
    %s54 = sld [smem:[#allocation2 + $0x2]]
    %v55 = vstv %s54
    %v56 = vmul.f32 %v53, %v55
    %v57 = vadd.f32 %v51, %v56
    %58 = vst [vmem:[%s3] sm:$0x1] %v57
    %v59 = vld [vmem:[%s2] sm:$0x1]
    %s60 = sld [smem:[#allocation2 + $0x80]]
    %v61 = vstv %s60
    %v62 = vmul.f32 %v59, %v61
    %s63 = sld [smem:[#allocation4 + $0x1]]
    %v64 = vstv %s63
    %v65 = vadd.f32 %v62, %v64
    %v66 = vld [vmem:[%s46] sm:$0x1]
    %s67 = sld [smem:[#allocation2 + $0x81]]
    %v68 = vstv %s67
    %v69 = vmul.f32 %v66, %v68
    %v70 = vadd.f32 %v65, %v69
    %v71 = vld [vmem:[%s52] sm:$0x1]
    %s72 = sld [smem:[#allocation2 + $0x82]]
    %v73 = vstv %s72
    %v74 = vmul.f32 %v71, %v73
    %v75 = vadd.f32 %v70, %v74
    %s76 = scalar_lea.vmem %s3, 1
    %77 = vst [vmem:[%s76] sm:$0x1] %v75
    %v78 = vld [vmem:[%s2] sm:$0x1]
    %s79 = sld [smem:[#allocation2 + $0x100]]
    %v80 = vstv %s79
    %v81 = vmul.f32 %v78, %v80
    %s82 = sld [smem:[#allocation4 + $0x2]]
    %v83 = vstv %s82
    %v84 = vadd.f32 %v81, %v83
    %v85 = vld [vmem:[%s46] sm:$0x1]
    %s86 = sld [smem:[#allocation2 + $0x101]]
    %v87 = vstv %s86
    %v88 = vmul.f32 %v85, %v87
    %v89 = vadd.f32 %v84, %v88
    %v90 = vld [vmem:[%s52] sm:$0x1]
    %s91 = sld [smem:[#allocation2 + $0x102]]
    %v92 = vstv %s91
    %v93 = vmul.f32 %v90, %v92
    %v94 = vadd.f32 %v89, %v93
    %s95 = scalar_lea.vmem %s3, 2
    %96 = vst [vmem:[%s95] sm:$0x1] %v94
    // Predicated region
    $region22: #{block1_forward_feature_major.1} parent=1 // pred_check
      _
    $region23: #{block1_forward_feature_major.1} parent=1 // pred_check_branch
      %98 = sbr.rel (0) target = $region25
    $region24: #{block1_forward_feature_major.1} parent=1 // pred_region
      _
    $region25: #{block1_forward_feature_major.1} parent=1 // pred_fallthru
      _
    // Predicated region
    $region26: #{block1_forward_feature_major.1} parent=1 // pred_check
      _
    $region27: #{block1_forward_feature_major.1} parent=1 // pred_check_branch
      %100 = sbr.rel (0) target = $region29
    $region28: #{block1_forward_feature_major.1} parent=1 // pred_region
      _
    $region29: #{block1_forward_feature_major.1} parent=1 // pred_fallthru
      _
    %101 = vsyncpa [#allocation3], 1
    %102 = vsyncpa [#allocation5], 1

</llo_original>
